<compile_context>
chip_gen: v5e
topology: v5e:2x2
jax: 0.10.0
libtpu: 0.0.40
codegen_flags: <defaults>
</compile_context>

<pallas_src>
import functools

import jax
import jax.numpy as jnp
from jax import lax
from jax.experimental import pallas as pl
from jax.experimental.pallas import tpu as pltpu

_F_OUT_PAD = 4     # all layer outputs are padded to 4 feature rows
_F_OUT_LAST = 2    # real output width of the last layer


# ----------------------------- Pallas kernel -------------------------------

def _gcn_fused_kernel(a_ref, x_ref, wrel_ref, wroot_ref, b_ref, o_ref,
                      ha_ref, hb_ref, *, tn, tk):
    """One (layer, destination-column-tile) step of the fused 3-layer GCN.

    a_ref     : (Np, tn)      int8  A^T slab; A^T[src, dst] = #edges src->dst
    x_ref     : (Fm, Np)      f32   padded input features (resident)
    wrel_ref  : (1, 4, Fm)    f32   this layer's W_rel (zero padded)
    wroot_ref : (1, 4, Fm)    f32   this layer's W_root (zero padded)
    b_ref     : (1, 4, 1)     f32   this layer's bias (zero padded)
    o_ref     : (2, tn)       f32   output tile
    ha_ref    : (Fm, Np)      f32   scratch: features written by layers 0 and 2
    hb_ref    : (Fm, Np)      f32   scratch: features written by layer 1
    """
    l = pl.program_id(0)                       # layer index (outer, sequential)
    i = pl.program_id(1)                       # destination-node column tile
    col = pl.multiple_of(i * tn, 128)

    w_rel = wrel_ref[0]                        # (4, Fm)
    w_root = wroot_ref[0]                      # (4, Fm)
    bias = b_ref[0]                            # (4, 1)
    f_out = w_rel.shape[0]
    f_m = x_ref.shape[0]
    n_pad = x_ref.shape[1]

    read_a = l % 2 == 1                        # layer 1 reads ha; 0/2 read x / hb

    def load_h(start, size):
        # Layer-input features for columns [start, start+size).  Layer 0 reads
        # x; layers 1/2 ping-pong between the scratch buffers.  The unselected
        # operands (possibly uninitialized at layer 0) only pass through the
        # elementwise select and never feed arithmetic.
        xs = x_ref[:, pl.ds(start, size)]
        has = ha_ref[:, pl.ds(start, size)]
        hbs = hb_ref[:, pl.ds(start, size)]
        return jnp.where(l == 0, xs, jnp.where(read_a, has, hbs))

    # Root / self term for this destination tile.
    root = jnp.dot(w_root, load_h(col, tn), preferred_element_type=jnp.float32)

    # Relational term, reassociated as (W_rel @ h) @ A^T and accumulated over
    # K-chunks of the source-node axis: the int8 A tile is upcast only in
    # bounded (tk, tn) chunks -- no whole-tile f32 copy of A is materialized.
    num_k = n_pad // tk

    def body(k, acc):
        ks = pl.multiple_of(k * tk, 128)
        p_chunk = jnp.dot(w_rel, load_h(ks, tk),
                          preferred_element_type=jnp.float32)           # (4, tk)
        a_chunk = a_ref[pl.ds(ks, tk), :].astype(jnp.float32)           # (tk, tn)
        return acc + jnp.dot(p_chunk, a_chunk,
                             preferred_element_type=jnp.float32)        # (4, tn)

    rel = lax.fori_loop(0, num_k, body,
                        jnp.zeros((f_out, tn), jnp.float32),
                        unroll=num_k <= 8)

    blk = jnp.tanh(rel + root + bias)                                    # (4, tn)

    # Features handed to the next layer, padded with exact zero rows so padded
    # feature rows never carry uninitialized scratch into a matmul.
    if f_m > f_out:
        blk_full = jnp.concatenate(
            [blk, jnp.zeros((f_m - f_out, tn), jnp.float32)], axis=0)
    else:
        blk_full = blk

    @pl.when(l % 2 == 0)            # layers 0 and 2 write the "a" buffer
    def _():
        ha_ref[:, pl.ds(col, tn)] = blk_full

    @pl.when(l % 2 == 1)            # layer 1 writes the "b" buffer
    def _():
        hb_ref[:, pl.ds(col, tn)] = blk_full

    # Each destination tile of the output is rewritten once per layer; only the
    # last layer's write survives in HBM, and only its first 2 rows are real.
    o_ref[...] = blk[: o_ref.shape[0], :]


# ------------------------------ Tile planning --------------------------------

def _round_up(x, m):
    return ((x + m - 1) // m) * m


def _vmem_budget_bytes():
    """~75% of this generation's physical VMEM (v7x: 64 MiB -> ~48 MiB)."""
    try:
        cap = int(pltpu.get_tpu_info().vmem_capacity_bytes)
        if cap <= 0:
            raise ValueError("bad vmem capacity")
    except Exception:
        cap = 64 << 20          # conservative fallback: assume v7x per-core VMEM
    return (3 * cap) // 4


def _plan_tiles(n_nodes, f_in_max, max_tile=None):
    """Pick (np_padded, tn, tk, vmem_limit).  np is padded to a multiple of the
    chosen column tile tn so divisibility never forces tn down to 128."""
    budget = _vmem_budget_bytes()
    np0 = max(128, _round_up(n_nodes, 128))

    candidates = [np0] + [t for t in (4096, 2048, 1024, 512, 256, 128) if t < np0]
    if max_tile is not None:
        candidates = [t for t in candidates if t <= max_tile] or [128]

    for tn in candidates:
        np_pad = _round_up(np0, tn)
        tk = 512 if np_pad % 512 == 0 else (256 if np_pad % 256 == 0 else 128)
        a_bytes = 2 * np_pad * tn                         # int8 A^T, double-buffered
        h_bytes = 2 * f_in_max * np_pad * 4               # ping-pong feature scratch
        x_bytes = 2 * f_in_max * np_pad * 4               # resident input (2 bufs)
        tmp_bytes = 2 * tk * tn * 4 + 4 * _F_OUT_PAD * tn * 4
        out_bytes = 2 * _F_OUT_LAST * tn * 4
        need = a_bytes + h_bytes + x_bytes + tmp_bytes + out_bytes + (1 << 20)
        if need <= budget:
            return np_pad, tn, tk, budget
    raise NotImplementedError(
        "Graph too large for the dense-adjacency kernel under the VMEM budget; "
        "TODO(synk): CSR + scalar-prefetch aggregation path.")


# --------------------------------- Wrapper ------------------------------------

@functools.partial(jax.jit, static_argnames=("max_tile",))
def feature_extractor_gcn(edge_index, x, params, *, max_tile=None):
    """edge_index: (2, E) int32 [src; dst], x: (N, nfeats) f32 -> (N, 2) f32."""
    n, nfeats = x.shape
    f_in_max = max(nfeats, _F_OUT_PAD)
    np_pad, tn, tk, vmem_limit = _plan_tiles(n, f_in_max, max_tile)
    num_tiles = np_pad // tn

    src, dst = edge_index[0], edge_index[1]
    # A^T[src, dst] = #edges src->dst; (W @ h) @ A^T aggregates over in-edges.
    # Counts are accumulated in int32 and clipped to 127 (int8 exactness guard),
    # then streamed to the kernel as int8.  Padded (fake) node rows stay zero.
    # TODO(synk): cache this build when the graph is static across calls.
    at = jnp.zeros((np_pad, np_pad), jnp.int32).at[src, dst].add(1)
    at = jnp.minimum(at, 127).astype(jnp.int8)

    # Feature-major node features, zero padded on both axes.
    x_pad = jnp.zeros((f_in_max, np_pad), jnp.float32).at[:nfeats, :n].set(x.T)

    # Per-layer weights zero-padded to a common (4, f_in_max) shape and stacked;
    # the zero pad rows/cols contribute exact zeros through every layer.
    dims = [(4, nfeats), (4, 4), (2, 4)]
    w_rel = jnp.zeros((3, _F_OUT_PAD, f_in_max), jnp.float32)
    w_root = jnp.zeros((3, _F_OUT_PAD, f_in_max), jnp.float32)
    bias = jnp.zeros((3, _F_OUT_PAD, 1), jnp.float32)
    for li, (fo, fi) in enumerate(dims, start=1):
        w_rel = w_rel.at[li - 1, :fo, :fi].set(params[f"w{li}_rel"])
        w_root = w_root.at[li - 1, :fo, :fi].set(params[f"w{li}_root"])
        bias = bias.at[li - 1, :fo, 0].set(params[f"b{li}"])

    cost = pl.CostEstimate(
        flops=int(3 * 2 * _F_OUT_PAD * np_pad * np_pad
                  + 3 * 4 * _F_OUT_PAD * f_in_max * np_pad),
        transcendentals=int(3 * _F_OUT_PAD * np_pad),
        bytes_accessed=int(np_pad * np_pad * (1 if num_tiles == 1 else 3)
                           + f_in_max * np_pad * 4 + 3 * _F_OUT_LAST * np_pad * 4),
    )

    out_pad = pl.pallas_call(
        functools.partial(_gcn_fused_kernel, tn=tn, tk=tk),
        out_shape=jax.ShapeDtypeStruct((_F_OUT_LAST, np_pad), jnp.float32),
        grid_spec=pltpu.PrefetchScalarGridSpec(
            num_scalar_prefetch=0,
            grid=(3, num_tiles),
            in_specs=[
                # A^T slab; constant block index when num_tiles == 1 -> DMA'd
                # once and VMEM-resident for all three layers.
                pl.BlockSpec((np_pad, tn), lambda l, i: (0, i)),
                pl.BlockSpec((f_in_max, np_pad), lambda l, i: (0, 0)),   # x
                pl.BlockSpec((1, _F_OUT_PAD, f_in_max), lambda l, i: (l, 0, 0)),
                pl.BlockSpec((1, _F_OUT_PAD, f_in_max), lambda l, i: (l, 0, 0)),
                pl.BlockSpec((1, _F_OUT_PAD, 1), lambda l, i: (l, 0, 0)),
            ],
            out_specs=pl.BlockSpec((_F_OUT_LAST, tn), lambda l, i: (0, i)),
            scratch_shapes=[
                pltpu.VMEM((f_in_max, np_pad), jnp.float32),   # h ping
                pltpu.VMEM((f_in_max, np_pad), jnp.float32),   # h pong
            ],
        ),
        compiler_params=pltpu.CompilerParams(
            # Layer axis must stay sequential (layer l+1 consumes all tiles of
            # layer l held in VMEM scratch).
            dimension_semantics=("arbitrary", "arbitrary"),
            vmem_limit_bytes=int(vmem_limit),
        ),
        cost_estimate=cost,
    )(at, x_pad, w_rel, w_root, bias)

    return out_pad[:, :n].T                     # (N, 2), node-major like the module


# -------------------------- Deterministic params ----------------------------

def _linear_init(key, out_f, in_f):
    # PyTorch nn.Linear default: U(-1/sqrt(in), 1/sqrt(in))
    bound = 1.0 / jnp.sqrt(jnp.float32(in_f))
    return jax.random.uniform(key, (out_f, in_f), jnp.float32, -bound, bound)


def init_params(key, nfeats):
    ks = jax.random.split(key, 9)
    dims = [(4, nfeats), (4, 4), (2, 4)]
    params = {}
    for li, (out_f, in_f) in enumerate(dims, start=1):
        k_rel, k_root, k_b = ks[(li - 1) * 3: li * 3]
        params[f"w{li}_rel"] = _linear_init(k_rel, out_f, in_f)
        params[f"w{li}_root"] = _linear_init(k_root, out_f, in_f)
        bound = 1.0 / jnp.sqrt(jnp.float32(in_f))
        params[f"b{li}"] = jax.random.uniform(k_b, (out_f,), jnp.float32, -bound, bound)
    return params


# ---------------------------- Pure-JAX reference -----------------------------

def _ref(edge_index, x, params):
    n = x.shape[0]
    src, dst = edge_index[0], edge_index[1]
    a = jnp.zeros((n, n), jnp.float32).at[dst, src].add(1.0)
    h = x
    with jax.default_matmul_precision("highest"):
        for li in (1, 2, 3):
            agg = a @ h
            h = jnp.tanh(agg @ params[f"w{li}_rel"].T
                         + h @ params[f"w{li}_root"].T
                         + params[f"b{li}"])
    return h


# --------------------------------- Main --------------------------------------

if __name__ == "__main__":
    key = jax.random.PRNGKey(0)
    k_x, k_e, k_p, k_x2, k_e2 = jax.random.split(key, 5)

    NFEATS = 8
    params = init_params(k_p, NFEATS)

    # Small graph: single-tile path (A^T DMA'd once, VMEM-resident for 3 layers).
    N, E = 16, 32
    x = jax.random.normal(k_x, (N, NFEATS), jnp.float32)
    edge_index = jax.random.randint(k_e, (2, E), 0, N, jnp.int32)
    out = jax.block_until_ready(feature_extractor_gcn(edge_index, x, params))
    ref = _ref(edge_index, x, params)
    assert out.shape == (N, 2)
    assert jnp.allclose(out, ref, atol=1e-5, rtol=1e-4), "mismatch (resident path)"

    # Slightly larger graph forced onto the multi-tile streaming path
    # (Np=384, tn=128 -> 3 column tiles, 3 K-chunks per tile).
    N2, E2 = 300, 900
    x2 = jax.random.normal(k_x2, (N2, NFEATS), jnp.float32)
    edge_index2 = jax.random.randint(k_e2, (2, E2), 0, N2, jnp.int32)
    out2 = jax.block_until_ready(
        feature_extractor_gcn(edge_index2, x2, params, max_tile=128))
    ref2 = _ref(edge_index2, x2, params)
    assert out2.shape == (N2, 2)
    assert jnp.allclose(out2, ref2, atol=1e-5, rtol=1e-4), "mismatch (tiled path)"

    print("KERNEL_OK")
</pallas_src>

<mosaic_0001>
module attributes {stable_mosaic.version = 11 : i64} {
  func.func @_gcn_fused_kernel(%arg0: i32, %arg1: i32, %arg2: memref<128x128xi8, #tpu.memory_space<vmem>>, %arg3: memref<8x128xf32, #tpu.memory_space<vmem>>, %arg4: memref<1x4x8xf32, #tpu.memory_space<vmem>>, %arg5: memref<1x4x8xf32, #tpu.memory_space<vmem>>, %arg6: memref<1x4x1xf32, #tpu.memory_space<vmem>>, %arg7: memref<2x128xf32, #tpu.memory_space<vmem>>, %arg8: memref<8x128xf32, #tpu.memory_space<vmem>>, %arg9: memref<8x128xf32, #tpu.memory_space<vmem>>) attributes {dimension_semantics = [#tpu.dimension_semantics<arbitrary>, #tpu.dimension_semantics<arbitrary>], iteration_bounds = array<i64: 3, 1>, scalar_prefetch = 0 : i64, scratch_operands = 2 : i64, tpu.core_type = #tpu.core_type<tc>, window_params = [{transform_indices = @transform_0, window_bounds = array<i64: 128, 128>}, {pipeline_mode = #tpu.pipeline_mode<synchronous>, transform_indices = @transform_1, window_bounds = array<i64: 8, 128>}, {transform_indices = @transform_2, window_bounds = array<i64: 1, 4, 8>}, {transform_indices = @transform_3, window_bounds = array<i64: 1, 4, 8>}, {transform_indices = @transform_4, window_bounds = array<i64: 1, 4, 1>}, {transform_indices = @transform_5, window_bounds = array<i64: 2, 128>}]} {
    %c128_i32 = arith.constant 128 : i32
    %0 = arith.muli %arg1, %c128_i32 : i32
    %1 = tpu.assume_multiple %0, 128 : i32
    %c0 = arith.constant 0 : index
    %c0_0 = arith.constant 0 : index
    %c0_1 = arith.constant 0 : index
    %2 = vector.load %arg4[%c0, %c0_0, %c0_1] : memref<1x4x8xf32, #tpu.memory_space<vmem>>, vector<1x4x8xf32>
    %3 = vector.shape_cast %2 : vector<1x4x8xf32> to vector<4x8xf32>
    %c0_2 = arith.constant 0 : index
    %c0_3 = arith.constant 0 : index
    %c0_4 = arith.constant 0 : index
    %4 = vector.load %arg5[%c0_2, %c0_3, %c0_4] : memref<1x4x8xf32, #tpu.memory_space<vmem>>, vector<1x4x8xf32>
    %5 = vector.shape_cast %4 : vector<1x4x8xf32> to vector<4x8xf32>
    %c0_5 = arith.constant 0 : index
    %c0_6 = arith.constant 0 : index
    %c0_7 = arith.constant 0 : index
    %6 = vector.load %arg6[%c0_5, %c0_6, %c0_7] : memref<1x4x1xf32, #tpu.memory_space<vmem>>, vector<1x4x1xf32>
    %7 = vector.shape_cast %6 : vector<1x4x1xf32> to vector<4x1xf32>
    %c2_i32 = arith.constant 2 : i32
    %c0_i32 = arith.constant 0 : i32
    %8 = arith.cmpi eq, %c2_i32, %c0_i32 : i32
    %c1_i32 = arith.constant 1 : i32
    %9 = arith.select %8, %c1_i32, %c2_i32 : i32
    %10 = arith.remsi %arg0, %9 : i32
    %c0_i32_8 = arith.constant 0 : i32
    %11 = arith.cmpi ne, %10, %c0_i32_8 : i32
    %c0_i32_9 = arith.constant 0 : i32
    %12 = arith.cmpi slt, %10, %c0_i32_9 : i32
    %c0_i32_10 = arith.constant 0 : i32
    %13 = arith.cmpi slt, %9, %c0_i32_10 : i32
    %14 = arith.xori %12, %13 : i1
    %15 = arith.andi %14, %11 : i1
    %16 = arith.addi %10, %9 : i32
    %17 = arith.select %15, %16, %10 : i32
    %c1_i32_11 = arith.constant 1 : i32
    %18 = arith.cmpi eq, %17, %c1_i32_11 : i32
    %c0_12 = arith.constant 0 : index
    %19 = arith.index_cast %1 : i32 to index
    %20 = vector.load %arg3[%c0_12, %19] : memref<8x128xf32, #tpu.memory_space<vmem>>, vector<8x128xf32>
    %c0_13 = arith.constant 0 : index
    %21 = arith.index_cast %1 : i32 to index
    %22 = vector.load %arg8[%c0_13, %21] : memref<8x128xf32, #tpu.memory_space<vmem>>, vector<8x128xf32>
    %c0_14 = arith.constant 0 : index
    %23 = arith.index_cast %1 : i32 to index
    %24 = vector.load %arg9[%c0_14, %23] : memref<8x128xf32, #tpu.memory_space<vmem>>, vector<8x128xf32>
    %c0_i32_15 = arith.constant 0 : i32
    %25 = arith.cmpi eq, %arg0, %c0_i32_15 : i32
    %26 = arith.select %18, %22, %24 : vector<8x128xf32>
    %27 = arith.select %25, %20, %26 : vector<8x128xf32>
    %cst = arith.constant dense<0.000000e+00> : vector<4x128xf32>
    %28 = tpu.matmul %5, %27, %cst {dimension_numbers = #tpu.dot_dimension_numbers<[1], [0], [0], [1], [0, 0, 1, 1], [], []>} : vector<4x8xf32>, vector<8x128xf32>, vector<4x128xf32> -> vector<4x128xf32>
    %cst_16 = arith.constant 0.000000e+00 : f32
    %29 = vector.broadcast %cst_16 : f32 to vector<4x128xf32>
    %c0_i32_17 = arith.constant 0 : i32
    %c128_i32_18 = arith.constant 128 : i32
    %30 = arith.muli %c0_i32_17, %c128_i32_18 : i32
    %31 = tpu.assume_multiple %30, 128 : i32
    %c0_19 = arith.constant 0 : index
    %32 = arith.index_cast %31 : i32 to index
    %33 = vector.load %arg3[%c0_19, %32] : memref<8x128xf32, #tpu.memory_space<vmem>>, vector<8x128xf32>
    %c0_20 = arith.constant 0 : index
    %34 = arith.index_cast %31 : i32 to index
    %35 = vector.load %arg8[%c0_20, %34] : memref<8x128xf32, #tpu.memory_space<vmem>>, vector<8x128xf32>
    %c0_21 = arith.constant 0 : index
    %36 = arith.index_cast %31 : i32 to index
    %37 = vector.load %arg9[%c0_21, %36] : memref<8x128xf32, #tpu.memory_space<vmem>>, vector<8x128xf32>
    %c0_i32_22 = arith.constant 0 : i32
    %38 = arith.cmpi eq, %arg0, %c0_i32_22 : i32
    %39 = arith.select %18, %35, %37 : vector<8x128xf32>
    %40 = arith.select %38, %33, %39 : vector<8x128xf32>
    %cst_23 = arith.constant dense<0.000000e+00> : vector<4x128xf32>
    %41 = tpu.matmul %3, %40, %cst_23 {dimension_numbers = #tpu.dot_dimension_numbers<[1], [0], [0], [1], [0, 0, 1, 1], [], []>} : vector<4x8xf32>, vector<8x128xf32>, vector<4x128xf32> -> vector<4x128xf32>
    %42 = arith.index_cast %31 : i32 to index
    %c0_24 = arith.constant 0 : index
    %43 = vector.load %arg2[%42, %c0_24] : memref<128x128xi8, #tpu.memory_space<vmem>>, vector<128x128xi8>
    %44 = arith.sitofp %43 : vector<128x128xi8> to vector<128x128xf32>
    %cst_25 = arith.constant dense<0.000000e+00> : vector<4x128xf32>
    %45 = tpu.matmul %41, %44, %cst_25 {dimension_numbers = #tpu.dot_dimension_numbers<[1], [0], [0], [1], [0, 0, 1, 1], [], []>} : vector<4x128xf32>, vector<128x128xf32>, vector<4x128xf32> -> vector<4x128xf32>
    %46 = arith.addf %29, %45 : vector<4x128xf32>
    %c1_i32_26 = arith.constant 1 : i32
    %47 = arith.addf %46, %28 : vector<4x128xf32>
    %48 = vector.broadcast %7 : vector<4x1xf32> to vector<4x128xf32>
    %49 = arith.addf %47, %48 : vector<4x128xf32>
    %50 = math.tanh %49 : vector<4x128xf32>
    %cst_27 = arith.constant 0.000000e+00 : f32
    %51 = vector.broadcast %cst_27 : f32 to vector<4x128xf32>
    %52 = tpu.concatenate %50, %51 in 0 : vector<4x128xf32>, vector<4x128xf32> -> vector<8x128xf32>
    %c2_i32_28 = arith.constant 2 : i32
    %c0_i32_29 = arith.constant 0 : i32
    %53 = arith.cmpi eq, %c2_i32_28, %c0_i32_29 : i32
    %c1_i32_30 = arith.constant 1 : i32
    %54 = arith.select %53, %c1_i32_30, %c2_i32_28 : i32
    %55 = arith.remsi %arg0, %54 : i32
    %c0_i32_31 = arith.constant 0 : i32
    %56 = arith.cmpi ne, %55, %c0_i32_31 : i32
    %c0_i32_32 = arith.constant 0 : i32
    %57 = arith.cmpi slt, %55, %c0_i32_32 : i32
    %c0_i32_33 = arith.constant 0 : i32
    %58 = arith.cmpi slt, %54, %c0_i32_33 : i32
    %59 = arith.xori %57, %58 : i1
    %60 = arith.andi %59, %56 : i1
    %61 = arith.addi %55, %54 : i32
    %62 = arith.select %60, %61, %55 : i32
    %c0_i32_34 = arith.constant 0 : i32
    %63 = arith.cmpi eq, %62, %c0_i32_34 : i32
    %64 = arith.extui %63 : i1 to i32
    %c0_i32_35 = arith.constant 0 : i32
    %65 = arith.cmpi ne, %64, %c0_i32_35 : i32
    scf.if %65 {
      %c0_46 = arith.constant 0 : index
      %81 = arith.index_cast %1 : i32 to index
      %82 = vector.load %arg8[%c0_46, %81] : memref<8x128xf32, #tpu.memory_space<vmem>>, vector<8x128xf32>
      tpu.vector_store %arg8[%c0_46, %81], %52 {strides = array<i32>} : memref<8x128xf32, #tpu.memory_space<vmem>>, vector<8x128xf32>,
    } else {
    }
    %c2_i32_36 = arith.constant 2 : i32
    %c0_i32_37 = arith.constant 0 : i32
    %66 = arith.cmpi eq, %c2_i32_36, %c0_i32_37 : i32
    %c1_i32_38 = arith.constant 1 : i32
    %67 = arith.select %66, %c1_i32_38, %c2_i32_36 : i32
    %68 = arith.remsi %arg0, %67 : i32
    %c0_i32_39 = arith.constant 0 : i32
    %69 = arith.cmpi ne, %68, %c0_i32_39 : i32
    %c0_i32_40 = arith.constant 0 : i32
    %70 = arith.cmpi slt, %68, %c0_i32_40 : i32
    %c0_i32_41 = arith.constant 0 : i32
    %71 = arith.cmpi slt, %67, %c0_i32_41 : i32
    %72 = arith.xori %70, %71 : i1
    %73 = arith.andi %72, %69 : i1
    %74 = arith.addi %68, %67 : i32
    %75 = arith.select %73, %74, %68 : i32
    %c1_i32_42 = arith.constant 1 : i32
    %76 = arith.cmpi eq, %75, %c1_i32_42 : i32
    %77 = arith.extui %76 : i1 to i32
    %c0_i32_43 = arith.constant 0 : i32
    %78 = arith.cmpi ne, %77, %c0_i32_43 : i32
    scf.if %78 {
      %c0_46 = arith.constant 0 : index
      %81 = arith.index_cast %1 : i32 to index
      %82 = vector.load %arg9[%c0_46, %81] : memref<8x128xf32, #tpu.memory_space<vmem>>, vector<8x128xf32>
      tpu.vector_store %arg9[%c0_46, %81], %52 {strides = array<i32>} : memref<8x128xf32, #tpu.memory_space<vmem>>, vector<8x128xf32>,
    } else {
    }
    %79 = vector.extract_strided_slice %50 {offsets = [0, 0], sizes = [2, 128], strides = [1, 1]} : vector<4x128xf32> to vector<2x128xf32>
    %c0_44 = arith.constant 0 : index
    %c0_45 = arith.constant 0 : index
    %80 = vector.load %arg7[%c0_44, %c0_45] : memref<2x128xf32, #tpu.memory_space<vmem>>, vector<2x128xf32>
    tpu.vector_store %arg7[%c0_44, %c0_45], %79 {strides = array<i32>} : memref<2x128xf32, #tpu.memory_space<vmem>>, vector<2x128xf32>,
    return
  }
  func.func @transform_0(%arg0: i32, %arg1: i32) -> (i32, i32) {
    %c0_i32 = arith.constant 0 : i32
    %c0_i32_0 = arith.constant 0 : i32
    return %c0_i32, %arg1 : i32, i32
  }
  func.func @transform_1(%arg0: i32, %arg1: i32) -> (i32, i32) {
    %c0_i32 = arith.constant 0 : i32
    %c0_i32_0 = arith.constant 0 : i32
    %c0_i32_1 = arith.constant 0 : i32
    return %c0_i32, %c0_i32_0 : i32, i32
  }
  func.func @transform_2(%arg0: i32, %arg1: i32) -> (i32, i32, i32) {
    %c0_i32 = arith.constant 0 : i32
    %c0_i32_0 = arith.constant 0 : i32
    %c0_i32_1 = arith.constant 0 : i32
    return %arg0, %c0_i32, %c0_i32_0 : i32, i32, i32
  }
  func.func @transform_3(%arg0: i32, %arg1: i32) -> (i32, i32, i32) {
    %c0_i32 = arith.constant 0 : i32
    %c0_i32_0 = arith.constant 0 : i32
    %c0_i32_1 = arith.constant 0 : i32
    return %arg0, %c0_i32, %c0_i32_0 : i32, i32, i32
  }
  func.func @transform_4(%arg0: i32, %arg1: i32) -> (i32, i32, i32) {
    %c0_i32 = arith.constant 0 : i32
    %c0_i32_0 = arith.constant 0 : i32
    %c0_i32_1 = arith.constant 0 : i32
    return %arg0, %c0_i32, %c0_i32_0 : i32, i32, i32
  }
  func.func @transform_5(%arg0: i32, %arg1: i32) -> (i32, i32) {
    %c0_i32 = arith.constant 0 : i32
    %c0_i32_0 = arith.constant 0 : i32
    return %c0_i32, %arg1 : i32, i32
  }
}

</mosaic_0001>

<llo_original>
// kernel: feature_extractor_gcn.1
$region0: #{feature_extractor_gcn.1}
  #allocation0 [shape = 'u32[]', space=smem, size = 0x4, offset = 0x4, fixed_abs, tag = 'smem constant byte address 0x4 - core index']
  #allocation1 [shape = 'u32[72,128]{1,0:T(1,128)}', space=vmem, size = 0x9000, scoped, tag = 'internal scratch']
  #allocation2 [shape = 'f32[8,128]{1,0:T(8,128)}', space=vmem, size = 0x1000, scoped, tag = 'scratch operand']
  #allocation3 [shape = 'f32[8,128]{1,0:T(8,128)}', space=vmem, size = 0x1000, scoped, tag = 'scratch operand']
  %s0 = inlined_call_operand.vmem [shape: s8[128,128], index: 0, kind: input, shape index: {}]
  %s1 = inlined_call_operand.vmem [shape: f32[8,128], index: 1, kind: input, shape index: {}]
  %s2 = inlined_call_operand.vmem [shape: f32[3,4,8], index: 2, kind: input, shape index: {}]
  %s3 = inlined_call_operand.vmem [shape: f32[3,4,8], index: 3, kind: input, shape index: {}]
  %s4 = inlined_call_operand.vmem [shape: f32[3,4,1], index: 4, kind: input, shape index: {}]
  %s5 = inlined_call_operand.vmem [shape: f32[2,128], index: 5, kind: output, shape index: {}]
  %s6 = sld [smem:[#allocation0]]
  $region61: #{feature_extractor_gcn.1} parent=0
    _
  %s8 = ssub.s32 1, %s6
  %s9 = scalar_select 0, %s8, %s6
  loop: start=0, step=1, limit=5
  $region2: #{feature_extractor_gcn.1} parent=0 // loop_pre_header
    _
  $region3: #{feature_extractor_gcn.1} parent=0 // loop_header
    %s11 = sphi 0, %s15
    %p12 = scmp.ge.s32.totalorder %s11, 5
    %s18 = sphi 0, %s30
    %s19 = sphi 0, %s26
    %s20 = sphi 0, %s18
    %s21 = sphi 0, %s19
    %s22 = sphi 0, %s20
    %s23 = sphi 0, %s21
    %s33 = sphi 0, %s35
    %s36 = sphi 0, %s33
    %s37 = sphi 0, %s36
    %s53 = sphi 0, %s37
    %s57 = sphi 0, %s57
    %s59 = sphi 0, %s57
    %s60 = sphi 0, %s59
    %s74 = sphi 0, %s60
    %s80 = sphi 0, %s82
    %s83 = sphi 0, %s80
    %s84 = sphi 0, %s83
    %s100 = sphi 0, %s84
    %s106 = sphi 0, %s108
    %s109 = sphi 0, %s106
    %s110 = sphi 0, %s109
    %s126 = sphi 0, %s110
    %s132 = sphi 0, %s134
    %s135 = sphi 0, %s132
    %s136 = sphi 0, %s135
    %s152 = sphi 0, %s136
    %s158 = sphi 0, %s160
    %s161 = sphi 0, %s158
    %s162 = sphi 0, %s161
    %s178 = sphi 0, %s162
  $region4: #{feature_extractor_gcn.1} parent=0 // loop_header_branch
    %14 = sbr.rel (%p12) target = $region8
  $region5: #{feature_extractor_gcn.1} parent=0 // loop_body
    %s16 = ssub.s32 %s11, 1
    %s17 = ssub.s32 %s11, 2
    %s24 = sadd.s32 1, %s19
    %p25 = scmp.ge.s32.totalorder %s24, 1
    %s26 = scalar_select %p25, 0, %s24
    %s27 = sadd.s32 1, %s18
    %s28 = scalar_select %p25, %s27, %s18
    %p29 = scmp.ge.s32.totalorder %s28, 3
    %s30 = scalar_select %p29, 0, %s28
    %s31 = ssub.s32 %s19, %s26
    %p32 = scmp.eq.s32.totalorder %s31, 0
    %s34 = sadd.s32 %s33, 1
    %s35 = scalar_select %p32, %s33, %s34
    %p38 = pneg %p32
    %p39 = scmp.eq.s32.totalorder %s11, 2
    %p40 = por %p38, %p39
    %p41 = scmp.ne.s32.totalorder %s33, %s36
    %p42 = scmp.eq.s32.totalorder %s11, 0
    %p43 = por %p41, %p42
    %p44 = scmp.ne.s32.totalorder %s33, %s36
    %p45 = scmp.eq.s32.totalorder %s16, 2
    %p46 = por %p44, %p45
    %p47 = scmp.ne.s32.totalorder %s36, %s37
    %p48 = scmp.eq.s32.totalorder %s16, 0
    %p49 = por %p47, %p48
    %p50 = scmp.ne.s32.totalorder %s36, %s37
    %p51 = scmp.eq.s32.totalorder %s17, 2
    %p52 = por %p50, %p51
    %p54 = scmp.ne.s32.totalorder %s37, %s53
    %p55 = scmp.eq.s32.totalorder %s17, 0
    %p56 = por %p54, %p55
    %s58 = sadd.s32 %s57, 1
    %p61 = scmp.eq.s32.totalorder %s11, 2
    %p62 = scmp.ne.s32.totalorder %s57, %s59
    %p63 = scmp.eq.s32.totalorder %s11, 0
    %p64 = por %p62, %p63
    %p65 = scmp.ne.s32.totalorder %s57, %s59
    %p66 = scmp.eq.s32.totalorder %s16, 2
    %p67 = por %p65, %p66
    %p68 = scmp.ne.s32.totalorder %s59, %s60
    %p69 = scmp.eq.s32.totalorder %s16, 0
    %p70 = por %p68, %p69
    %p71 = scmp.ne.s32.totalorder %s59, %s60
    %p72 = scmp.eq.s32.totalorder %s17, 2
    %p73 = por %p71, %p72
    %p75 = scmp.ne.s32.totalorder %s60, %s74
    %p76 = scmp.eq.s32.totalorder %s17, 0
    %p77 = por %p75, %p76
    %s78 = ssub.s32 %s18, %s30
    %p79 = scmp.eq.s32.totalorder %s78, 0
    %s81 = sadd.s32 %s80, 1
    %s82 = scalar_select %p79, %s80, %s81
    %p85 = pneg %p79
    %p86 = scmp.eq.s32.totalorder %s11, 2
    %p87 = por %p85, %p86
    %p88 = scmp.ne.s32.totalorder %s80, %s83
    %p89 = scmp.eq.s32.totalorder %s11, 0
    %p90 = por %p88, %p89
    %p91 = scmp.ne.s32.totalorder %s80, %s83
    %p92 = scmp.eq.s32.totalorder %s16, 2
    %p93 = por %p91, %p92
    %p94 = scmp.ne.s32.totalorder %s83, %s84
    %p95 = scmp.eq.s32.totalorder %s16, 0
    %p96 = por %p94, %p95
    %p97 = scmp.ne.s32.totalorder %s83, %s84
    %p98 = scmp.eq.s32.totalorder %s17, 2
    %p99 = por %p97, %p98
    %p101 = scmp.ne.s32.totalorder %s84, %s100
    %p102 = scmp.eq.s32.totalorder %s17, 0
    %p103 = por %p101, %p102
    %s104 = ssub.s32 %s18, %s30
    %p105 = scmp.eq.s32.totalorder %s104, 0
    %s107 = sadd.s32 %s106, 1
    %s108 = scalar_select %p105, %s106, %s107
    %p111 = pneg %p105
    %p112 = scmp.eq.s32.totalorder %s11, 2
    %p113 = por %p111, %p112
    %p114 = scmp.ne.s32.totalorder %s106, %s109
    %p115 = scmp.eq.s32.totalorder %s11, 0
    %p116 = por %p114, %p115
    %p117 = scmp.ne.s32.totalorder %s106, %s109
    %p118 = scmp.eq.s32.totalorder %s16, 2
    %p119 = por %p117, %p118
    %p120 = scmp.ne.s32.totalorder %s109, %s110
    %p121 = scmp.eq.s32.totalorder %s16, 0
    %p122 = por %p120, %p121
    %p123 = scmp.ne.s32.totalorder %s109, %s110
    %p124 = scmp.eq.s32.totalorder %s17, 2
    %p125 = por %p123, %p124
    %p127 = scmp.ne.s32.totalorder %s110, %s126
    %p128 = scmp.eq.s32.totalorder %s17, 0
    %p129 = por %p127, %p128
    %s130 = ssub.s32 %s18, %s30
    %p131 = scmp.eq.s32.totalorder %s130, 0
    %s133 = sadd.s32 %s132, 1
    %s134 = scalar_select %p131, %s132, %s133
    %p137 = pneg %p131
    %p138 = scmp.eq.s32.totalorder %s11, 2
    %p139 = por %p137, %p138
    %p140 = scmp.ne.s32.totalorder %s132, %s135
    %p141 = scmp.eq.s32.totalorder %s11, 0
    %p142 = por %p140, %p141
    %p143 = scmp.ne.s32.totalorder %s132, %s135
    %p144 = scmp.eq.s32.totalorder %s16, 2
    %p145 = por %p143, %p144
    %p146 = scmp.ne.s32.totalorder %s135, %s136
    %p147 = scmp.eq.s32.totalorder %s16, 0
    %p148 = por %p146, %p147
    %p149 = scmp.ne.s32.totalorder %s135, %s136
    %p150 = scmp.eq.s32.totalorder %s17, 2
    %p151 = por %p149, %p150
    %p153 = scmp.ne.s32.totalorder %s136, %s152
    %p154 = scmp.eq.s32.totalorder %s17, 0
    %p155 = por %p153, %p154
    %s156 = ssub.s32 %s19, %s26
    %p157 = scmp.eq.s32.totalorder %s156, 0
    %s159 = sadd.s32 %s158, 1
    %s160 = scalar_select %p157, %s158, %s159
    %p163 = pneg %p157
    %p164 = scmp.eq.s32.totalorder %s11, 2
    %p165 = por %p163, %p164
    %p166 = scmp.ne.s32.totalorder %s158, %s161
    %p167 = scmp.eq.s32.totalorder %s11, 0
    %p168 = por %p166, %p167
    %p169 = scmp.ne.s32.totalorder %s158, %s161
    %p170 = scmp.eq.s32.totalorder %s16, 2
    %p171 = por %p169, %p170
    %p172 = scmp.ne.s32.totalorder %s161, %s162
    %p173 = scmp.eq.s32.totalorder %s16, 0
    %p174 = por %p172, %p173
    %p175 = scmp.ne.s32.totalorder %s161, %s162
    %p176 = scmp.eq.s32.totalorder %s17, 2
    %p177 = por %p175, %p176
    %p179 = scmp.ne.s32.totalorder %s162, %s178
    %p180 = scmp.eq.s32.totalorder %s17, 0
    %p181 = por %p179, %p180
    %p182 = scmp.le.s32.totalorder 1, %s11
    %p183 = scmp.lt.s32.totalorder %s11, 4
    %p184 = pnand %p182, %p183
    %p185 = pneg %p184
    // Predicated region
    $region9: #{feature_extractor_gcn.1} parent=5 // pred_check
      _
    $region10: #{feature_extractor_gcn.1} parent=5 // pred_check_branch
      %187 = sbr.rel (%p184) target = $region12
    $region11: #{feature_extractor_gcn.1} parent=5 // pred_region
      %s188 = ssub.s32 %s11, 1
      // Predicated region
      $region13: #{feature_extractor_gcn.1} parent=11 // pred_check
        %p189 = pneg %p49
      $region14: #{feature_extractor_gcn.1} parent=11 // pred_check_branch
        %191 = sbr.rel (%p189) target = $region16
      $region15: #{feature_extractor_gcn.1} parent=11 // pred_region
        %p192 = scmp.lt.s32.totalorder %s21, 0
        %s193 = scalar_select %p192, %s21, 0
        %s194 = smul.addr %s193, 8
        %s195 = scalar_lea.vmem %s0, %s194
      $region16: #{feature_extractor_gcn.1} parent=11 // pred_fallthru
        _
      // Predicated region
      $region17: #{feature_extractor_gcn.1} parent=11 // pred_check
        %p196 = pneg %p70
      $region18: #{feature_extractor_gcn.1} parent=11 // pred_check_branch
        %198 = sbr.rel (%p196) target = $region20
      $region19: #{feature_extractor_gcn.1} parent=11 // pred_region
        _
      $region20: #{feature_extractor_gcn.1} parent=11 // pred_fallthru
        _
    $region12: #{feature_extractor_gcn.1} parent=5 // pred_fallthru
      _
    %p199 = scmp.lt.s32.totalorder %s11, 3
    // Predicated region
    $region21: #{feature_extractor_gcn.1} parent=5 // pred_check
      %p200 = pneg %p199
    $region22: #{feature_extractor_gcn.1} parent=5 // pred_check_branch
      %202 = sbr.rel (%p200) target = $region24
    $region23: #{feature_extractor_gcn.1} parent=5 // pred_region
      // Predicated region
      $region25: #{feature_extractor_gcn.1} parent=23 // pred_check
        %p203 = pneg %p90
      $region26: #{feature_extractor_gcn.1} parent=23 // pred_check_branch
        %205 = sbr.rel (%p203) target = $region28
      $region27: #{feature_extractor_gcn.1} parent=23 // pred_region
        %p206 = scmp.lt.s32.totalorder %s18, 2
        %s207 = scalar_select %p206, %s18, 2
        %s208 = smul.addr %s207, 4
        %s209 = scalar_lea.vmem %s2, %s208
      $region28: #{feature_extractor_gcn.1} parent=23 // pred_fallthru
        _
      // Predicated region
      $region29: #{feature_extractor_gcn.1} parent=23 // pred_check
        %p210 = pneg %p116
      $region30: #{feature_extractor_gcn.1} parent=23 // pred_check_branch
        %212 = sbr.rel (%p210) target = $region32
      $region31: #{feature_extractor_gcn.1} parent=23 // pred_region
        %p213 = scmp.lt.s32.totalorder %s18, 2
        %s214 = scalar_select %p213, %s18, 2
        %s215 = smul.addr %s214, 4
        %s216 = scalar_lea.vmem %s3, %s215
      $region32: #{feature_extractor_gcn.1} parent=23 // pred_fallthru
        _
      // Predicated region
      $region33: #{feature_extractor_gcn.1} parent=23 // pred_check
        %p217 = pneg %p142
      $region34: #{feature_extractor_gcn.1} parent=23 // pred_check_branch
        %219 = sbr.rel (%p217) target = $region36
      $region35: #{feature_extractor_gcn.1} parent=23 // pred_region
        %p220 = scmp.lt.s32.totalorder %s18, 2
        %s221 = scalar_select %p220, %s18, 2
        %s222 = smul.addr %s221, 4
        %s223 = scalar_lea.vmem %s4, %s222
      $region36: #{feature_extractor_gcn.1} parent=23 // pred_fallthru
        _
    $region24: #{feature_extractor_gcn.1} parent=5 // pred_fallthru
      _
    %p224 = scmp.le.s32.totalorder 1, %s11
    %p225 = scmp.lt.s32.totalorder %s11, 4
    %p226 = pnand %p224, %p225
    %p227 = pneg %p226
    // Predicated region
    $region37: #{feature_extractor_gcn.1} parent=5 // pred_check
      _
    $region38: #{feature_extractor_gcn.1} parent=5 // pred_check_branch
      %229 = sbr.rel (%p226) target = $region40
    $region39: #{feature_extractor_gcn.1} parent=5 // pred_region
      %s230 = ssub.s32 %s11, 1
      %p231 = scmp.lt.s32.totalorder %s21, 0
      %s232 = scalar_select %p231, %s21, 0
      %s233 = smul.addr %s232, 8
      %s234 = scalar_lea.vmem %s0, %s233
      %p235 = pneg %p49
      %p236 = pneg %p46
      %p237 = pneg %p70
      %p238 = pneg %p67
      %p239 = scmp.lt.s32.totalorder %s20, 2
      %s240 = scalar_select %p239, %s20, 2
      %s241 = smul.addr %s240, 4
      %s242 = scalar_lea.vmem %s2, %s241
      %p243 = pneg %p96
      %p244 = pneg %p93
      %p245 = scmp.lt.s32.totalorder %s20, 2
      %s246 = scalar_select %p245, %s20, 2
      %s247 = smul.addr %s246, 4
      %s248 = scalar_lea.vmem %s3, %s247
      %p249 = pneg %p122
      %p250 = pneg %p119
      %p251 = scmp.lt.s32.totalorder %s20, 2
      %s252 = scalar_select %p251, %s20, 2
      %s253 = smul.addr %s252, 4
      %s254 = scalar_lea.vmem %s4, %s253
      %p255 = pneg %p148
      %p256 = pneg %p145
      %p257 = pneg %p174
      %p258 = pneg %p171
      %p259 = scmp.lt.s32.totalorder %s21, 0
      %s260 = scalar_select %p259, %s21, 0
      %s261 = smul.addr %s260, 2
      %s262 = scalar_lea.vmem %s5, %s261
      %p263 = scmp.lt.s32.totalorder %s21, 0
      %s264 = scalar_select %p263, %s21, 0
      %s265 = smul.addr %s264, 8
      %s266 = scalar_lea.vmem %s0, %s265
      %p267 = scmp.lt.s32.totalorder %s20, 2
      %s268 = scalar_select %p267, %s20, 2
      %s269 = smul.addr %s268, 4
      %s270 = scalar_lea.vmem %s2, %s269
      %p271 = scmp.lt.s32.totalorder %s20, 2
      %s272 = scalar_select %p271, %s20, 2
      %s273 = smul.addr %s272, 4
      %s274 = scalar_lea.vmem %s3, %s273
      %p275 = scmp.lt.s32.totalorder %s20, 2
      %s276 = scalar_select %p275, %s20, 2
      %s277 = smul.addr %s276, 4
      %s278 = scalar_lea.vmem %s4, %s277
      %p279 = scmp.lt.s32.totalorder %s21, 0
      %s280 = scalar_select %p279, %s21, 0
      %s281 = smul.addr %s280, 2
      %s282 = scalar_lea.vmem %s5, %s281
      %s283 = smul.u32 %s21, 128
      %v284 = vld [vmem:[%s270] sm:$0xf]
      %v285 = vld [vmem:[%s274] sm:$0xf]
      %v286 = vld [vmem:[%s278] sm:$0xf]
      %p287 = scmp.lt.s32.totalorder %s20, 0
      %s288 = ssub.s32 0, %s20
      %s289 = scalar_select %p287, %s288, %s20
      %s290 = sand.u32 %s289, 1
      %s291 = ssub.s32 0, %s290
      %s292 = scalar_select %p287, %s291, %s290
      %p293 = scmp.ne.s32.totalorder %s292, 0
      %p294 = scmp.lt.s32.totalorder %s292, 0
      %p295 = pnand %p294, %p293
      %p296 = pneg %p295
      %s297 = sadd.s32 %s292, 2
      %s298 = scalar_select %p296, %s297, %s292
      %p299 = scmp.eq.s32.totalorder %s298, 1
      %s300 = sshra.s32 %s283, 7
      %s301 = sand.u32 %s283, 127
      %s302 = scalar_lea.vmem %s1, %s300
      %v303 = vld [vmem:[%s302] sm:$0xff]
      %s304 = scalar_lea.vmem [#allocation2], %s300
      %v305 = vld [vmem:[%s304] sm:$0xff]
      %s306 = scalar_lea.vmem [#allocation3], %s300
      %v307 = vld [vmem:[%s306] sm:$0xff]
      %p308 = scmp.eq.s32.totalorder %s20, 0
      %s309 = scalar_select %p299, 1, 0
      %v310 = vstv %s309
      %vm311 = vcmp.eq.s32.totalorder %v310, 1
      %v312 = vsel %vm311, %v305, %v307
      %s313 = scalar_select %p308, 1, 0
      %v314 = vstv %s313
      %vm315 = vcmp.eq.s32.totalorder %v314, 1
      %v316 = vsel %vm315, %v303, %v312
      %vm317 = vcmask 64512
      %v319 = vsel %vm317, %v285, 0
      %321 = vmatpush.msra.mxu0 0.0
      %322 = vmatpush.msra.mxu0 0.0
      %323 = vmatpush.msra.mxu0 0.0
      %324 = vmatpush.msra.mxu0 0.0
      %325 = vmatpush.msra.mxu0 0.0
      %326 = vmatpush.msra.mxu0 0.0
      %327 = vmatpush.msra.mxu0 0.0
      %328 = vmatpush.msra.mxu0 0.0
      %329 = vmatpush.msra.mxu0 0.0
      %330 = vmatpush.msra.mxu0 0.0
      %331 = vmatpush.msra.mxu0 0.0
      %332 = vmatpush.msra.mxu0 0.0
      %333 = vmatpush.msra.mxu0 0.0
      %334 = vmatpush.msra.mxu0 0.0
      %335 = vmatpush.msra.mxu0 0.0
      %336 = vmatpush.msra.mxu0 %v316
      %337 = vmatmul.f32.gmra.mxu0 %v319
      %v338 = vpop.f32.mrf.mxu0
      %v339 = vadd.f32 0.0, %v338
      %340 = vdwg.mxu0
      %v341 = vld [vmem:[%s1] sm:$0xff]
      %v342 = vld [vmem:[#allocation2] sm:$0xff]
      %v343 = vld [vmem:[#allocation3] sm:$0xff]
      %v344 = vsel %vm311, %v342, %v343
      %v345 = vsel %vm315, %v341, %v344
      %v347 = vsel %vm317, %v284, 0
      %349 = vmatpush.msra.mxu0 0.0
      %350 = vmatpush.msra.mxu0 0.0
      %351 = vmatpush.msra.mxu0 0.0
      %352 = vmatpush.msra.mxu0 0.0
      %353 = vmatpush.msra.mxu0 0.0
      %354 = vmatpush.msra.mxu0 0.0
      %355 = vmatpush.msra.mxu0 0.0
      %356 = vmatpush.msra.mxu0 0.0
      %357 = vmatpush.msra.mxu0 0.0
      %358 = vmatpush.msra.mxu0 0.0
      %359 = vmatpush.msra.mxu0 0.0
      %360 = vmatpush.msra.mxu0 0.0
      %361 = vmatpush.msra.mxu0 0.0
      %362 = vmatpush.msra.mxu0 0.0
      %363 = vmatpush.msra.mxu0 0.0
      %364 = vmatpush.msra.mxu0 %v345
      %365 = vmatmul.f32.gmra.mxu0 %v347
      %v366 = vpop.f32.mrf.mxu0
      %v367 = vadd.f32 0.0, %v366
      %368 = vdwg.mxu0
      %v369 = vld [vmem:[%s266] sm:$0xff]
      %v370 = vld [vmem:[%s266 + $0x8] sm:$0xff]
      %v371 = vld [vmem:[%s266 + $0x10] sm:$0xff]
      %v372 = vld [vmem:[%s266 + $0x18] sm:$0xff]
      %v373 = vunpack.c.0.s8 %v369
      %v374 = vunpack.c.1.s8 %v369
      %v375 = vunpack.c.2.s8 %v369
      %v376 = vunpack.c.3.s8 %v369
      %v377 = vunpack.c.0.s8 %v370
      %v378 = vunpack.c.1.s8 %v370
      %v379 = vunpack.c.2.s8 %v370
      %v380 = vunpack.c.3.s8 %v370
      %v381 = vunpack.c.0.s8 %v371
      %v382 = vunpack.c.1.s8 %v371
      %v383 = vunpack.c.2.s8 %v371
      %v384 = vunpack.c.3.s8 %v371
      %v385 = vunpack.c.0.s8 %v372
      %v386 = vunpack.c.1.s8 %v372
      %v387 = vunpack.c.2.s8 %v372
      %v388 = vunpack.c.3.s8 %v372
      %v389 = vcvt.s32.f32 %v373
      %v390 = vcvt.s32.f32 %v374
      %v391 = vcvt.s32.f32 %v375
      %v392 = vcvt.s32.f32 %v376
      %v393 = vcvt.s32.f32 %v377
      %v394 = vcvt.s32.f32 %v378
      %v395 = vcvt.s32.f32 %v379
      %v396 = vcvt.s32.f32 %v380
      %v397 = vcvt.s32.f32 %v381
      %v398 = vcvt.s32.f32 %v382
      %v399 = vcvt.s32.f32 %v383
      %v400 = vcvt.s32.f32 %v384
      %v401 = vcvt.s32.f32 %v385
      %v402 = vcvt.s32.f32 %v386
      %v403 = vcvt.s32.f32 %v387
      %v404 = vcvt.s32.f32 %v388
      %405 = vmatpush.msra.mxu0 %v404
      %406 = vmatpush.msra.mxu0 %v403
      %407 = vmatpush.msra.mxu0 %v402
      %408 = vmatpush.msra.mxu0 %v401
      %409 = vmatpush.msra.mxu0 %v400
      %410 = vmatpush.msra.mxu0 %v399
      %411 = vmatpush.msra.mxu0 %v398
      %412 = vmatpush.msra.mxu0 %v397
      %413 = vmatpush.msra.mxu0 %v396
      %414 = vmatpush.msra.mxu0 %v395
      %415 = vmatpush.msra.mxu0 %v394
      %416 = vmatpush.msra.mxu0 %v393
      %417 = vmatpush.msra.mxu0 %v392
      %418 = vmatpush.msra.mxu0 %v391
      %419 = vmatpush.msra.mxu0 %v390
      %420 = vmatpush.msra.mxu0 %v389
      %421 = vmatmul.f32.gmra.mxu0 %v367
      %v422 = vpop.f32.mrf.mxu0
      %v423 = vadd.f32 %v339, %v422
      %424 = vdwg.mxu0
      %426 = vset.pattern.permute.xlu0 0
      %427 = vperm.xlu0 %426, %v286
      %v428 = vpop.permute.xlu0 %427
      %v430 = vadd.f32 %v423, %v428
      %v431 = vtanh.pop %v430
      %vm432 = vcmask 1043456
      %v433 = vsel %vm432, %v431, 0.0
      %p434 = scmp.eq.s32.totalorder %s298, 0
      // Predicated region
      $region41: #{feature_extractor_gcn.1} parent=39 // pred_check
        %p435 = pneg %p434
      $region42: #{feature_extractor_gcn.1} parent=39 // pred_check_branch
        %437 = sbr.rel (%p435) target = $region44
      $region43: #{feature_extractor_gcn.1} parent=39 // pred_region
        %438 = vst [vmem:[%s304] sm:$0xff] %v433
      $region44: #{feature_extractor_gcn.1} parent=39 // pred_fallthru
        _
      // Predicated region
      $region45: #{feature_extractor_gcn.1} parent=39 // pred_check
        %p439 = pneg %p299
      $region46: #{feature_extractor_gcn.1} parent=39 // pred_check_branch
        %441 = sbr.rel (%p439) target = $region48
      $region47: #{feature_extractor_gcn.1} parent=39 // pred_region
        %442 = vst [vmem:[%s306] sm:$0xff] %v433
      $region48: #{feature_extractor_gcn.1} parent=39 // pred_fallthru
        _
      %443 = vst [vmem:[%s282] sm:$0x3] %v431
      %p444 = scmp.lt.s32.totalorder %s21, 0
      %s445 = scalar_select %p444, %s21, 0
      %s446 = smul.addr %s445, 2
      %s447 = scalar_lea.vmem %s5, %s446
      // Predicated region
      $region49: #{feature_extractor_gcn.1} parent=39 // pred_check
        %p448 = pneg %p171
      $region50: #{feature_extractor_gcn.1} parent=39 // pred_check_branch
        %450 = sbr.rel (%p448) target = $region52
      $region51: #{feature_extractor_gcn.1} parent=39 // pred_region
        _
      $region52: #{feature_extractor_gcn.1} parent=39 // pred_fallthru
        _
      // Predicated region
      $region53: #{feature_extractor_gcn.1} parent=39 // pred_check
        %p451 = pneg %p171
      $region54: #{feature_extractor_gcn.1} parent=39 // pred_check_branch
        %453 = sbr.rel (%p451) target = $region56
      $region55: #{feature_extractor_gcn.1} parent=39 // pred_region
        %p454 = scmp.lt.s32.totalorder %s21, 0
        %s455 = scalar_select %p454, %s21, 0
        %s456 = smul.addr %s455, 2
        %s457 = scalar_lea.vmem %s5, %s456
      $region56: #{feature_extractor_gcn.1} parent=39 // pred_fallthru
        _
    $region40: #{feature_extractor_gcn.1} parent=5 // pred_fallthru
      _
    %p458 = scmp.le.s32.totalorder 2, %s11
    // Predicated region
    $region57: #{feature_extractor_gcn.1} parent=5 // pred_check
      %p459 = pneg %p458
    $region58: #{feature_extractor_gcn.1} parent=5 // pred_check_branch
      %461 = sbr.rel (%p459) target = $region60
    $region59: #{feature_extractor_gcn.1} parent=5 // pred_region
      %s462 = ssub.s32 %s11, 2
    $region60: #{feature_extractor_gcn.1} parent=5 // pred_fallthru
      _
  $region6: #{feature_extractor_gcn.1} parent=0 // loop_footer
    %s15 = sadd.s32 1, %s11
  $region7: #{feature_extractor_gcn.1} parent=0 // loop_footer_branch
    %10 = sbr.rel target = $region3
  $region8: #{feature_extractor_gcn.1} parent=0 // loop_exit
    _

</llo_original>
